<compile_context>
chip_gen: v7x
topology: tpu7x:2x2x1
jax: 0.10.0
libtpu: 0.0.40
codegen_flags: <defaults>
</compile_context>

<pallas_src>
import jax
import jax.numpy as jnp
from jax.experimental import pallas as pl
from jax.experimental.pallas import tpu as pltpu


def _round_up(x, m):
    return ((x + m - 1) // m) * m


def _vae_streaming_kernel(recons_ref, inputs_ref, mu_ref, lv_ref, mse_ref, kld_ref):
    s = pl.program_id(1)

    @pl.when(s == 0)
    def _init():
        mse_ref[...] = jnp.zeros_like(mse_ref)

    # Streaming sum-of-squared-error partial.  Cast per tile (inputs may be bf16);
    # all arithmetic in f32.  Fold (tile_r, tile_c) -> (8, tile_c) with VPU adds only
    # (layout-preserving reshape along the sublane axis); no cross-lane reduce here.
    r = recons_ref[...].astype(jnp.float32)
    x = inputs_ref[...].astype(jnp.float32)
    d = r - x
    sq = d * d
    tr, tc = sq.shape
    mse_ref[...] += jnp.sum(sq.reshape(tr // 8, 8, tc), axis=0)

    # KLD inner sum: tiny (B, D) computation, exactly once per core (last step) so the
    # exp() (EUP) and reduce (XLU) stay out of the steady-state streaming loop.
    @pl.when(s == pl.num_programs(1) - 1)
    def _kld():
        lv = lv_ref[...].astype(jnp.float32)
        mu = mu_ref[...].astype(jnp.float32)
        kld_inner = jnp.sum(1.0 + lv - mu * mu - jnp.exp(lv))
        kld_ref[...] = jnp.zeros_like(kld_ref) + kld_inner


def vae_loss_pallas(recons, inputs, mu, log_var, kld_weight, *,
                    tile_rows=512, tile_cols=1024, nsplit=2):
    """Returns dict matching PyTorch VAELoss.forward semantics."""
    assert recons.shape == inputs.shape
    assert tile_rows % 8 == 0 and tile_cols % 128 == 0
    B = int(mu.shape[0])
    n_recon = int(recons.size)          # true element count for mse 'mean'

    # ---- Flatten to a lane-dense slab and zero-pad to a tileable shape ----
    cols = tile_cols
    rows = max(1, -(-n_recon // cols))                  # cdiv
    tr = min(tile_rows, _round_up(rows, 8))             # shrink tile for tiny inputs
    row_blocks = _round_up(-(-rows // tr), nsplit)      # cdiv, then multiple of nsplit
    total_rows = row_blocks * tr
    padded = total_rows * cols
    steps = row_blocks // nsplit

    def to_slab(a):
        flat = a.reshape(-1)                            # keep original dtype
        flat = jnp.pad(flat, (0, padded - n_recon))
        return flat.reshape(total_rows, cols)

    recons_s = to_slab(recons)
    inputs_s = to_slab(inputs)

    mse_part, kld_part = pl.pallas_call(
        _vae_streaming_kernel,
        out_shape=(
            jax.ShapeDtypeStruct((nsplit * 8, cols), jnp.float32),  # per-core SSE partials
            jax.ShapeDtypeStruct((nsplit * 8, 128), jnp.float32),   # per-core kld inner sum
        ),
        grid_spec=pltpu.PrefetchScalarGridSpec(
            num_scalar_prefetch=0,
            grid=(nsplit, steps),
            in_specs=[
                pl.BlockSpec((tr, cols), lambda c, s: (c * steps + s, 0)),
                pl.BlockSpec((tr, cols), lambda c, s: (c * steps + s, 0)),
                pl.BlockSpec(mu.shape, lambda c, s: (0, 0)),        # VMEM-resident
                pl.BlockSpec(log_var.shape, lambda c, s: (0, 0)),   # VMEM-resident
            ],
            out_specs=(
                pl.BlockSpec((8, cols), lambda c, s: (c, 0)),
                pl.BlockSpec((8, 128), lambda c, s: (c, 0)),
            ),
        ),
        compiler_params=pltpu.CompilerParams(
            dimension_semantics=("parallel", "arbitrary")),
    )(recons_s, inputs_s, mu, log_var)

    # ---- Tiny final combine in plain JAX (as recommended by perf review) ----
    mse_sum = jnp.sum(mse_part)                         # single cross-lane reduce
    recons_loss = mse_sum / jnp.float32(n_recon)        # F.mse_loss(mean over all elems)
    kld_inner = kld_part[0, 0]
    kld_loss = jnp.float32(-0.5 / B) * kld_inner        # mean over batch of -0.5*sum_d(...)
    loss = recons_loss + jnp.asarray(kld_weight, jnp.float32) * kld_loss
    return {
        "loss": loss,
        "Reconstruction_Loss": jax.lax.stop_gradient(recons_loss),
        "KLD": jax.lax.stop_gradient(-kld_loss),
    }


def vae_loss_ref(recons, inputs, mu, log_var, kld_weight):
    recons = recons.astype(jnp.float32)
    inputs = inputs.astype(jnp.float32)
    mu = mu.astype(jnp.float32)
    log_var = log_var.astype(jnp.float32)
    recons_loss = jnp.mean((recons - inputs) ** 2)
    kld_loss = jnp.mean(
        -0.5 * jnp.sum(1.0 + log_var - mu**2 - jnp.exp(log_var), axis=1), axis=0
    )
    loss = recons_loss + kld_weight * kld_loss
    return {"loss": loss, "Reconstruction_Loss": recons_loss, "KLD": -kld_loss}


if __name__ == "__main__":
    key = jax.random.PRNGKey(0)
    k1, k2, k3, k4 = jax.random.split(key, 4)

    B, C, H, W = 2, 4, 16, 16   # small VAE image shapes
    D = 32                      # latent dim
    kld_weight = 0.005          # kwargs['M_N']

    recons = jax.random.normal(k1, (B, C, H, W), dtype=jnp.float32)
    inputs = jax.random.normal(k2, (B, C, H, W), dtype=jnp.float32)
    mu = jax.random.normal(k3, (B, D), dtype=jnp.float32) * 0.5
    log_var = jax.random.normal(k4, (B, D), dtype=jnp.float32) * 0.1

    out = vae_loss_pallas(recons, inputs, mu, log_var, kld_weight)
    out = {k: jax.block_until_ready(v) for k, v in out.items()}

    ref = vae_loss_ref(recons, inputs, mu, log_var, kld_weight)
    for k in ("loss", "Reconstruction_Loss", "KLD"):
        assert jnp.allclose(out[k], ref[k], rtol=1e-5, atol=1e-5), (
            k, out[k], ref[k]
        )

    print("KERNEL_OK")
</pallas_src>

<mosaic_0001>
module attributes {stable_mosaic.version = 11 : i64} {
  func.func @_vae_streaming_kernel(%arg0: i32, %arg1: i32, %arg2: memref<8x1024xf32, #tpu.memory_space<vmem>>, %arg3: memref<8x1024xf32, #tpu.memory_space<vmem>>, %arg4: memref<2x32xf32, #tpu.memory_space<vmem>>, %arg5: memref<2x32xf32, #tpu.memory_space<vmem>>, %arg6: memref<8x1024xf32, #tpu.memory_space<vmem>>, %arg7: memref<8x128xf32, #tpu.memory_space<vmem>>) attributes {dimension_semantics = [#tpu.dimension_semantics<parallel>, #tpu.dimension_semantics<arbitrary>], iteration_bounds = array<i64: 2, 1>, scalar_prefetch = 0 : i64, scratch_operands = 0 : i64, tpu.core_type = #tpu.core_type<tc>, window_params = [{transform_indices = @transform_0, window_bounds = array<i64: 8, 1024>}, {transform_indices = @transform_1, window_bounds = array<i64: 8, 1024>}, {pipeline_mode = #tpu.pipeline_mode<synchronous>, transform_indices = @transform_2, window_bounds = array<i64: 2, 32>}, {pipeline_mode = #tpu.pipeline_mode<synchronous>, transform_indices = @transform_3, window_bounds = array<i64: 2, 32>}, {transform_indices = @transform_4, window_bounds = array<i64: 8, 1024>}, {transform_indices = @transform_5, window_bounds = array<i64: 8, 128>}]} {
    %c0_i32 = arith.constant 0 : i32
    %0 = arith.cmpi eq, %arg1, %c0_i32 : i32
    %1 = arith.extui %0 : i1 to i32
    %c0_i32_0 = arith.constant 0 : i32
    %2 = arith.cmpi ne, %1, %c0_i32_0 : i32
    scf.if %2 {
      %cst_10 = arith.constant 0.000000e+00 : f32
      %15 = vector.broadcast %cst_10 : f32 to vector<8x1024xf32>
      %c0_11 = arith.constant 0 : index
      %c0_12 = arith.constant 0 : index
      %16 = vector.load %arg6[%c0_11, %c0_12] : memref<8x1024xf32, #tpu.memory_space<vmem>>, vector<8x1024xf32>
      tpu.vector_store %arg6[%c0_11, %c0_12], %15 {strides = array<i32>} : memref<8x1024xf32, #tpu.memory_space<vmem>>, vector<8x1024xf32>,
    } else {
    }
    %c0 = arith.constant 0 : index
    %c0_1 = arith.constant 0 : index
    %3 = vector.load %arg2[%c0, %c0_1] : memref<8x1024xf32, #tpu.memory_space<vmem>>, vector<8x1024xf32>
    %c0_2 = arith.constant 0 : index
    %c0_3 = arith.constant 0 : index
    %4 = vector.load %arg3[%c0_2, %c0_3] : memref<8x1024xf32, #tpu.memory_space<vmem>>, vector<8x1024xf32>
    %5 = arith.subf %3, %4 : vector<8x1024xf32>
    %6 = arith.mulf %5, %5 : vector<8x1024xf32>
    %c0_4 = arith.constant 0 : index
    %c0_5 = arith.constant 0 : index
    %7 = vector.load %arg6[%c0_4, %c0_5] : memref<8x1024xf32, #tpu.memory_space<vmem>>, vector<8x1024xf32>
    %8 = vector.shape_cast %6 : vector<8x1024xf32> to vector<1x8x1024xf32>
    %cst = arith.constant dense<0.000000e+00> : vector<8x1024xf32>
    %9 = vector.multi_reduction <add>, %8, %cst [0] : vector<1x8x1024xf32> to vector<8x1024xf32>
    %10 = arith.addf %7, %9 : vector<8x1024xf32>
    %c0_6 = arith.constant 0 : index
    %c0_7 = arith.constant 0 : index
    %11 = vector.load %arg6[%c0_6, %c0_7] : memref<8x1024xf32, #tpu.memory_space<vmem>>, vector<8x1024xf32>
    tpu.vector_store %arg6[%c0_6, %c0_7], %10 {strides = array<i32>} : memref<8x1024xf32, #tpu.memory_space<vmem>>, vector<8x1024xf32>,
    %c0_i32_8 = arith.constant 0 : i32
    %12 = arith.cmpi eq, %arg1, %c0_i32_8 : i32
    %13 = arith.extui %12 : i1 to i32
    %c0_i32_9 = arith.constant 0 : i32
    %14 = arith.cmpi ne, %13, %c0_i32_9 : i32
    scf.if %14 {
      %c0_10 = arith.constant 0 : index
      %c0_11 = arith.constant 0 : index
      %15 = vector.load %arg5[%c0_10, %c0_11] : memref<2x32xf32, #tpu.memory_space<vmem>>, vector<2x32xf32>
      %c0_12 = arith.constant 0 : index
      %c0_13 = arith.constant 0 : index
      %16 = vector.load %arg4[%c0_12, %c0_13] : memref<2x32xf32, #tpu.memory_space<vmem>>, vector<2x32xf32>
      %cst_14 = arith.constant 1.000000e+00 : f32
      %17 = vector.broadcast %cst_14 : f32 to vector<2x32xf32>
      %18 = arith.addf %17, %15 : vector<2x32xf32>
      %19 = arith.mulf %16, %16 : vector<2x32xf32>
      %20 = arith.subf %18, %19 : vector<2x32xf32>
      %21 = math.exp %15 : vector<2x32xf32>
      %22 = arith.subf %20, %21 : vector<2x32xf32>
      %23 = vector.shape_cast %22 : vector<2x32xf32> to vector<1x2x32xf32>
      %cst_15 = arith.constant dense<0.000000e+00> : vector<1xf32>
      %24 = vector.multi_reduction <add>, %23, %cst_15 [1, 2] : vector<1x2x32xf32> to vector<1xf32>
      %25 = vector.shape_cast %24 : vector<1xf32> to vector<1x1x1xf32>
      %26 = vector.extract %25[0, 0, 0] : f32 from vector<1x1x1xf32>
      %cst_16 = arith.constant 0.000000e+00 : f32
      %27 = vector.broadcast %cst_16 : f32 to vector<8x128xf32>
      %28 = vector.broadcast %26 : f32 to vector<8x128xf32>
      %29 = arith.addf %27, %28 : vector<8x128xf32>
      %c0_17 = arith.constant 0 : index
      %c0_18 = arith.constant 0 : index
      %30 = vector.load %arg7[%c0_17, %c0_18] : memref<8x128xf32, #tpu.memory_space<vmem>>, vector<8x128xf32>
      tpu.vector_store %arg7[%c0_17, %c0_18], %29 {strides = array<i32>} : memref<8x128xf32, #tpu.memory_space<vmem>>, vector<8x128xf32>,
    } else {
    }
    return
  }
  func.func @transform_0(%arg0: i32, %arg1: i32) -> (i32, i32) {
    %c1_i32 = arith.constant 1 : i32
    %0 = arith.muli %arg0, %c1_i32 : i32
    %1 = arith.addi %0, %arg1 : i32
    %c0_i32 = arith.constant 0 : i32
    %c0_i32_0 = arith.constant 0 : i32
    return %1, %c0_i32 : i32, i32
  }
  func.func @transform_1(%arg0: i32, %arg1: i32) -> (i32, i32) {
    %c1_i32 = arith.constant 1 : i32
    %0 = arith.muli %arg0, %c1_i32 : i32
    %1 = arith.addi %0, %arg1 : i32
    %c0_i32 = arith.constant 0 : i32
    %c0_i32_0 = arith.constant 0 : i32
    return %1, %c0_i32 : i32, i32
  }
  func.func @transform_2(%arg0: i32, %arg1: i32) -> (i32, i32) {
    %c0_i32 = arith.constant 0 : i32
    %c0_i32_0 = arith.constant 0 : i32
    %c0_i32_1 = arith.constant 0 : i32
    return %c0_i32, %c0_i32_0 : i32, i32
  }
  func.func @transform_3(%arg0: i32, %arg1: i32) -> (i32, i32) {
    %c0_i32 = arith.constant 0 : i32
    %c0_i32_0 = arith.constant 0 : i32
    %c0_i32_1 = arith.constant 0 : i32
    return %c0_i32, %c0_i32_0 : i32, i32
  }
  func.func @transform_4(%arg0: i32, %arg1: i32) -> (i32, i32) {
    %c0_i32 = arith.constant 0 : i32
    %c0_i32_0 = arith.constant 0 : i32
    return %arg0, %c0_i32 : i32, i32
  }
  func.func @transform_5(%arg0: i32, %arg1: i32) -> (i32, i32) {
    %c0_i32 = arith.constant 0 : i32
    %c0_i32_0 = arith.constant 0 : i32
    return %arg0, %c0_i32 : i32, i32
  }
}

</mosaic_0001>

<llo_original>
// kernel: tpu_custom_call.1
$region0: #{tpu_custom_call.1}
  #allocation0 [shape = 'u32[]', space=smem, size = 0x4, offset = 0x4, fixed_abs, tag = 'smem constant byte address 0x4 - core index']
  #allocation1 [shape = 'u32[144,128]{1,0:T(1,128)}', space=vmem, size = 0x12000, scoped, tag = 'internal scratch']
  %s0 = inlined_call_operand.hbm [shape: f32[16,1024], index: 0, kind: input, shape index: {}]
  %s1 = inlined_call_operand.hbm [shape: f32[16,1024], index: 1, kind: input, shape index: {}]
  %s2 = inlined_call_operand.vmem [shape: f32[2,32], index: 2, kind: input, shape index: {}]
  %s3 = inlined_call_operand.vmem [shape: f32[2,32], index: 3, kind: input, shape index: {}]
  %s4 = inlined_call_operand.hbm [shape: f32[16,1024], index: 4, kind: output, shape index: {0}]
  %s5 = inlined_call_operand.hbm [shape: f32[16,128], index: 5, kind: output, shape index: {1}]
  %6 = xla_tuple %s4, %s5
  %s7 = sld [smem:[#allocation0]]
  $region73: #{tpu_custom_call.1} parent=0
    _
  %s9 = ssub.s32 1, %s7
  %s10 = scalar_select 0, %s9, %s7
  $region1: #{tpu_custom_call.1} parent=0
    #allocation2 [shape = 'u8[65536]{0}', space=vmem, size = 0x10000, scoped, tag = 'input window, operand 0']
    #allocation3 [shape = 's32[2]{0}', space=sflag, size = 0x8, scoped, tag = 'scoped memory for tpu_custom_call.1']
    #allocation4 [shape = 's32[2]{0}', space=sflag, size = 0x8, scoped, tag = 'scoped memory for tpu_custom_call.1']
    #allocation5 [shape = 'u8[65536]{0}', space=vmem, size = 0x10000, scoped, tag = 'input window, operand 1']
    #allocation6 [shape = 's32[2]{0}', space=sflag, size = 0x8, scoped, tag = 'scoped memory for tpu_custom_call.1']
    #allocation7 [shape = 'u8[65536]{0}', space=vmem, size = 0x10000, scoped, tag = 'output window, operand 0']
    #allocation8 [shape = 'u8[8192]{0}', space=vmem, size = 0x2000, scoped, tag = 'output window, operand 1']
    #allocation9 [shape = 's32[2]{0}', space=sflag, size = 0x8, scoped, tag = 'scoped memory for tpu_custom_call.1']
    %11 = vsyncpa [#allocation3], 0
    %s12 = scalar_lea.sflag [#allocation3], 1
    %13 = vsyncpa %s12, 0
    %14 = vsyncpa [#allocation6], 0
    %s15 = scalar_lea.sflag [#allocation6], 1
    %16 = vsyncpa %s15, 0
    %17 = vsyncpa [#allocation4], 0
    %s18 = scalar_lea.sflag [#allocation4], 1
    %19 = vsyncpa %s18, 0
    %20 = vsyncpa [#allocation9], 0
    %s21 = scalar_lea.sflag [#allocation9], 1
    %22 = vsyncpa %s21, 0
    loop: start=0, step=1, limit=4
    $region2: #{tpu_custom_call.1} parent=1 // loop_pre_header
      _
    $region3: #{tpu_custom_call.1} parent=1 // loop_header
      %s24 = sphi 0, %s28
      %p25 = scmp.ge.s32.totalorder %s24, 4
      %s31 = sphi 0, %s43
      %s32 = sphi 0, %s39
      %s33 = sphi 0, %s31
      %s34 = sphi 0, %s32
      %s35 = sphi 0, %s33
      %s36 = sphi 0, %s34
      %s48 = sphi 0, %s50
      %s51 = sphi 0, %s48
      %s52 = sphi 0, %s51
      %s68 = sphi 0, %s52
      %s76 = sphi 0, %s78
      %s79 = sphi 0, %s76
      %s80 = sphi 0, %s79
      %s96 = sphi 0, %s80
      %s100 = sphi 0, %s100
      %s102 = sphi 0, %s100
      %s103 = sphi 0, %s102
      %s117 = sphi 0, %s103
      %s121 = sphi 0, %s121
      %s123 = sphi 0, %s121
      %s124 = sphi 0, %s123
      %s138 = sphi 0, %s124
      %s144 = sphi 0, %s146
      %s147 = sphi 0, %s144
      %s148 = sphi 0, %s147
      %s164 = sphi 0, %s148
      %s170 = sphi 0, %s172
      %s173 = sphi 0, %s170
      %s174 = sphi 0, %s173
      %s190 = sphi 0, %s174
    $region4: #{tpu_custom_call.1} parent=1 // loop_header_branch
      %27 = sbr.rel (%p25) target = $region8
    $region5: #{tpu_custom_call.1} parent=1 // loop_body
      %s29 = ssub.s32 %s24, 1
      %s30 = ssub.s32 %s24, 2
      %s37 = sadd.s32 1, %s32
      %p38 = scmp.ge.s32.totalorder %s37, 1
      %s39 = scalar_select %p38, 0, %s37
      %s40 = sadd.s32 1, %s31
      %s41 = scalar_select %p38, %s40, %s31
      %p42 = scmp.ge.s32.totalorder %s41, 2
      %s43 = scalar_select %p42, 0, %s41
      %s44 = sadd.s32 %s31, %s32
      %s45 = sadd.s32 %s43, %s39
      %s46 = ssub.s32 %s44, %s45
      %p47 = scmp.eq.s32.totalorder %s46, 0
      %s49 = sadd.s32 %s48, 1
      %s50 = scalar_select %p47, %s48, %s49
      %p53 = pneg %p47
      %p54 = scmp.eq.s32.totalorder %s24, 1
      %p55 = por %p53, %p54
      %p56 = scmp.ne.s32.totalorder %s48, %s51
      %p57 = scmp.eq.s32.totalorder %s24, 0
      %p58 = por %p56, %p57
      %p59 = scmp.ne.s32.totalorder %s48, %s51
      %p60 = scmp.eq.s32.totalorder %s29, 1
      %p61 = por %p59, %p60
      %p62 = scmp.ne.s32.totalorder %s51, %s52
      %p63 = scmp.eq.s32.totalorder %s29, 0
      %p64 = por %p62, %p63
      %p65 = scmp.ne.s32.totalorder %s51, %s52
      %p66 = scmp.eq.s32.totalorder %s30, 1
      %p67 = por %p65, %p66
      %p69 = scmp.ne.s32.totalorder %s52, %s68
      %p70 = scmp.eq.s32.totalorder %s30, 0
      %p71 = por %p69, %p70
      %s72 = sadd.s32 %s31, %s32
      %s73 = sadd.s32 %s43, %s39
      %s74 = ssub.s32 %s72, %s73
      %p75 = scmp.eq.s32.totalorder %s74, 0
      %s77 = sadd.s32 %s76, 1
      %s78 = scalar_select %p75, %s76, %s77
      %p81 = pneg %p75
      %p82 = scmp.eq.s32.totalorder %s24, 1
      %p83 = por %p81, %p82
      %p84 = scmp.ne.s32.totalorder %s76, %s79
      %p85 = scmp.eq.s32.totalorder %s24, 0
      %p86 = por %p84, %p85
      %p87 = scmp.ne.s32.totalorder %s76, %s79
      %p88 = scmp.eq.s32.totalorder %s29, 1
      %p89 = por %p87, %p88
      %p90 = scmp.ne.s32.totalorder %s79, %s80
      %p91 = scmp.eq.s32.totalorder %s29, 0
      %p92 = por %p90, %p91
      %p93 = scmp.ne.s32.totalorder %s79, %s80
      %p94 = scmp.eq.s32.totalorder %s30, 1
      %p95 = por %p93, %p94
      %p97 = scmp.ne.s32.totalorder %s80, %s96
      %p98 = scmp.eq.s32.totalorder %s30, 0
      %p99 = por %p97, %p98
      %s101 = sadd.s32 %s100, 1
      %p104 = scmp.eq.s32.totalorder %s24, 1
      %p105 = scmp.ne.s32.totalorder %s100, %s102
      %p106 = scmp.eq.s32.totalorder %s24, 0
      %p107 = por %p105, %p106
      %p108 = scmp.ne.s32.totalorder %s100, %s102
      %p109 = scmp.eq.s32.totalorder %s29, 1
      %p110 = por %p108, %p109
      %p111 = scmp.ne.s32.totalorder %s102, %s103
      %p112 = scmp.eq.s32.totalorder %s29, 0
      %p113 = por %p111, %p112
      %p114 = scmp.ne.s32.totalorder %s102, %s103
      %p115 = scmp.eq.s32.totalorder %s30, 1
      %p116 = por %p114, %p115
      %p118 = scmp.ne.s32.totalorder %s103, %s117
      %p119 = scmp.eq.s32.totalorder %s30, 0
      %p120 = por %p118, %p119
      %s122 = sadd.s32 %s121, 1
      %p125 = scmp.eq.s32.totalorder %s24, 1
      %p126 = scmp.ne.s32.totalorder %s121, %s123
      %p127 = scmp.eq.s32.totalorder %s24, 0
      %p128 = por %p126, %p127
      %p129 = scmp.ne.s32.totalorder %s121, %s123
      %p130 = scmp.eq.s32.totalorder %s29, 1
      %p131 = por %p129, %p130
      %p132 = scmp.ne.s32.totalorder %s123, %s124
      %p133 = scmp.eq.s32.totalorder %s29, 0
      %p134 = por %p132, %p133
      %p135 = scmp.ne.s32.totalorder %s123, %s124
      %p136 = scmp.eq.s32.totalorder %s30, 1
      %p137 = por %p135, %p136
      %p139 = scmp.ne.s32.totalorder %s124, %s138
      %p140 = scmp.eq.s32.totalorder %s30, 0
      %p141 = por %p139, %p140
      %s142 = ssub.s32 %s31, %s43
      %p143 = scmp.eq.s32.totalorder %s142, 0
      %s145 = sadd.s32 %s144, 1
      %s146 = scalar_select %p143, %s144, %s145
      %p149 = pneg %p143
      %p150 = scmp.eq.s32.totalorder %s24, 1
      %p151 = por %p149, %p150
      %p152 = scmp.ne.s32.totalorder %s144, %s147
      %p153 = scmp.eq.s32.totalorder %s24, 0
      %p154 = por %p152, %p153
      %p155 = scmp.ne.s32.totalorder %s144, %s147
      %p156 = scmp.eq.s32.totalorder %s29, 1
      %p157 = por %p155, %p156
      %p158 = scmp.ne.s32.totalorder %s147, %s148
      %p159 = scmp.eq.s32.totalorder %s29, 0
      %p160 = por %p158, %p159
      %p161 = scmp.ne.s32.totalorder %s147, %s148
      %p162 = scmp.eq.s32.totalorder %s30, 1
      %p163 = por %p161, %p162
      %p165 = scmp.ne.s32.totalorder %s148, %s164
      %p166 = scmp.eq.s32.totalorder %s30, 0
      %p167 = por %p165, %p166
      %s168 = ssub.s32 %s31, %s43
      %p169 = scmp.eq.s32.totalorder %s168, 0
      %s171 = sadd.s32 %s170, 1
      %s172 = scalar_select %p169, %s170, %s171
      %p175 = pneg %p169
      %p176 = scmp.eq.s32.totalorder %s24, 1
      %p177 = por %p175, %p176
      %p178 = scmp.ne.s32.totalorder %s170, %s173
      %p179 = scmp.eq.s32.totalorder %s24, 0
      %p180 = por %p178, %p179
      %p181 = scmp.ne.s32.totalorder %s170, %s173
      %p182 = scmp.eq.s32.totalorder %s29, 1
      %p183 = por %p181, %p182
      %p184 = scmp.ne.s32.totalorder %s173, %s174
      %p185 = scmp.eq.s32.totalorder %s29, 0
      %p186 = por %p184, %p185
      %p187 = scmp.ne.s32.totalorder %s173, %s174
      %p188 = scmp.eq.s32.totalorder %s30, 1
      %p189 = por %p187, %p188
      %p191 = scmp.ne.s32.totalorder %s174, %s190
      %p192 = scmp.eq.s32.totalorder %s30, 0
      %p193 = por %p191, %p192
      %p194 = scmp.le.s32.totalorder 1, %s24
      %p195 = scmp.lt.s32.totalorder %s24, 3
      %p196 = pnand %p194, %p195
      %p197 = pneg %p196
      // Predicated region
      $region9: #{tpu_custom_call.1} parent=5 // pred_check
        _
      $region10: #{tpu_custom_call.1} parent=5 // pred_check_branch
        %199 = sbr.rel (%p196) target = $region12
      $region11: #{tpu_custom_call.1} parent=5 // pred_region
        %s200 = ssub.s32 %s24, 1
        // Predicated region
        $region13: #{tpu_custom_call.1} parent=11 // pred_check
          %p201 = pneg %p113
        $region14: #{tpu_custom_call.1} parent=11 // pred_check_branch
          %203 = sbr.rel (%p201) target = $region16
        $region15: #{tpu_custom_call.1} parent=11 // pred_region
          _
        $region16: #{tpu_custom_call.1} parent=11 // pred_fallthru
          _
        // Predicated region
        $region17: #{tpu_custom_call.1} parent=11 // pred_check
          %p204 = pneg %p134
        $region18: #{tpu_custom_call.1} parent=11 // pred_check_branch
          %206 = sbr.rel (%p204) target = $region20
        $region19: #{tpu_custom_call.1} parent=11 // pred_region
          _
        $region20: #{tpu_custom_call.1} parent=11 // pred_fallthru
          _
      $region12: #{tpu_custom_call.1} parent=5 // pred_fallthru
        _
      %p207 = scmp.lt.s32.totalorder %s24, 2
      // Predicated region
      $region21: #{tpu_custom_call.1} parent=5 // pred_check
        %p208 = pneg %p207
      $region22: #{tpu_custom_call.1} parent=5 // pred_check_branch
        %210 = sbr.rel (%p208) target = $region24
      $region23: #{tpu_custom_call.1} parent=5 // pred_region
        // Predicated region
        $region25: #{tpu_custom_call.1} parent=23 // pred_check
          %p211 = pneg %p58
        $region26: #{tpu_custom_call.1} parent=23 // pred_check_branch
          %213 = sbr.rel (%p211) target = $region28
        $region27: #{tpu_custom_call.1} parent=23 // pred_region
          %s214 = sand.u32 %s48, 1
          %s215 = scalar_lea.sflag [#allocation3], %s214
          %s216 = sand.u32 %s48, 1
          %s217 = smul.addr %s216, 64
          %s218 = scalar_lea.vmem [#allocation2], %s217
          %s219 = sadd.s32 %s31, %s32
          %s221 = ssub.s32 1024, 1024
          %222 = vsyncadd %s215, %s221
          %s223 = smul.addr %s219, 8
          %s224 = smul.addr %s223, 128
          %s225 = scalar_lea.hbm %s0, %s224
          %s227 = sshll.u32 %s218, 4
          %s228 = int_to_ptr.vmem [resolvable:$true] %s227
          %230 = dma.hbm_to_vmem [thread:$0]  %s225, 1024, %s228, %s215
        $region28: #{tpu_custom_call.1} parent=23 // pred_fallthru
          _
        // Predicated region
        $region29: #{tpu_custom_call.1} parent=23 // pred_check
          %p231 = pneg %p86
        $region30: #{tpu_custom_call.1} parent=23 // pred_check_branch
          %233 = sbr.rel (%p231) target = $region32
        $region31: #{tpu_custom_call.1} parent=23 // pred_region
          %s234 = sand.u32 %s76, 1
          %s235 = scalar_lea.sflag [#allocation6], %s234
          %s236 = sand.u32 %s76, 1
          %s237 = smul.addr %s236, 64
          %s238 = scalar_lea.vmem [#allocation5], %s237
          %s239 = sadd.s32 %s31, %s32
          %s241 = ssub.s32 1024, 1024
          %242 = vsyncadd %s235, %s241
          %s243 = smul.addr %s239, 8
          %s244 = smul.addr %s243, 128
          %s245 = scalar_lea.hbm %s1, %s244
          %s247 = sshll.u32 %s238, 4
          %s248 = int_to_ptr.vmem [resolvable:$true] %s247
          %250 = dma.hbm_to_vmem [thread:$0]  %s245, 1024, %s248, %s235
        $region32: #{tpu_custom_call.1} parent=23 // pred_fallthru
          _
      $region24: #{tpu_custom_call.1} parent=5 // pred_fallthru
        _
      %p251 = scmp.le.s32.totalorder 1, %s24
      %p252 = scmp.lt.s32.totalorder %s24, 3
      %p253 = pnand %p251, %p252
      %p254 = pneg %p253
      // Predicated region
      $region33: #{tpu_custom_call.1} parent=5 // pred_check
        _
      $region34: #{tpu_custom_call.1} parent=5 // pred_check_branch
        %256 = sbr.rel (%p253) target = $region36
      $region35: #{tpu_custom_call.1} parent=5 // pred_region
        %s257 = ssub.s32 %s24, 1
        %s258 = sand.u32 %s51, 1
        %s259 = scalar_lea.sflag [#allocation3], %s258
        %s260 = sand.u32 %s51, 1
        %s261 = smul.addr %s260, 64
        %s262 = scalar_lea.vmem [#allocation2], %s261
        // Predicated region
        $region37: #{tpu_custom_call.1} parent=35 // pred_check
          %p263 = pneg %p64
        $region38: #{tpu_custom_call.1} parent=35 // pred_check_branch
          %265 = sbr.rel (%p263) target = $region40
        $region39: #{tpu_custom_call.1} parent=35 // pred_region
          %266 = dma.done %s259, 1024
        $region40: #{tpu_custom_call.1} parent=35 // pred_fallthru
          _
        %s267 = sand.u32 %s79, 1
        %s268 = scalar_lea.sflag [#allocation6], %s267
        %s269 = sand.u32 %s79, 1
        %s270 = smul.addr %s269, 64
        %s271 = scalar_lea.vmem [#allocation5], %s270
        // Predicated region
        $region41: #{tpu_custom_call.1} parent=35 // pred_check
          %p272 = pneg %p92
        $region42: #{tpu_custom_call.1} parent=35 // pred_check_branch
          %274 = sbr.rel (%p272) target = $region44
        $region43: #{tpu_custom_call.1} parent=35 // pred_region
          %275 = dma.done %s268, 1024
        $region44: #{tpu_custom_call.1} parent=35 // pred_fallthru
          _
        %s276 = sand.u32 %s51, 1
        %s277 = scalar_lea.sflag [#allocation3], %s276
        %s278 = sand.u32 %s51, 1
        %s279 = smul.addr %s278, 64
        %s280 = scalar_lea.vmem [#allocation2], %s279
        %p281 = pneg %p64
        %p282 = pneg %p61
        %s283 = sand.u32 %s79, 1
        %s284 = scalar_lea.sflag [#allocation6], %s283
        %s285 = sand.u32 %s79, 1
        %s286 = smul.addr %s285, 64
        %s287 = scalar_lea.vmem [#allocation5], %s286
        %p288 = pneg %p92
        %p289 = pneg %p89
        %p290 = pneg %p113
        %p291 = pneg %p110
        %p292 = pneg %p134
        %p293 = pneg %p131
        %p294 = pneg %p160
        %p295 = pneg %p157
        %s296 = sand.u32 %s147, 1
        %s297 = scalar_lea.sflag [#allocation4], %s296
        %s298 = sand.u32 %s147, 1
        %s299 = smul.addr %s298, 64
        %s300 = scalar_lea.vmem [#allocation7], %s299
        %p301 = pneg %p186
        %p302 = pneg %p183
        %s303 = sand.u32 %s173, 1
        %s304 = scalar_lea.sflag [#allocation9], %s303
        %s305 = sand.u32 %s173, 1
        %s306 = smul.addr %s305, 8
        %s307 = scalar_lea.vmem [#allocation8], %s306
        %s308 = sadd.s32 %s33, %s34
        %s309 = sadd.s32 %s33, %s34
        %p310 = scmp.eq.s32.totalorder %s34, 0
        // Predicated region
        $region45: #{tpu_custom_call.1} parent=35 // pred_check
          %p311 = pneg %p310
        $region46: #{tpu_custom_call.1} parent=35 // pred_check_branch
          %313 = sbr.rel (%p311) target = $region48
        $region47: #{tpu_custom_call.1} parent=35 // pred_region
          %314 = vst [vmem:[%s300] sm:$0xff] 0.0
          %315 = vst [vmem:[%s300 + $0x8] sm:$0xff] 0.0
          %316 = vst [vmem:[%s300 + $0x10] sm:$0xff] 0.0
          %317 = vst [vmem:[%s300 + $0x18] sm:$0xff] 0.0
          %318 = vst [vmem:[%s300 + $0x20] sm:$0xff] 0.0
          %319 = vst [vmem:[%s300 + $0x28] sm:$0xff] 0.0
          %320 = vst [vmem:[%s300 + $0x30] sm:$0xff] 0.0
          %321 = vst [vmem:[%s300 + $0x38] sm:$0xff] 0.0
        $region48: #{tpu_custom_call.1} parent=35 // pred_fallthru
          _
        %v322 = vld [vmem:[%s262] sm:$0xff]
        %v323 = vld [vmem:[%s262 + $0x8] sm:$0xff]
        %v324 = vld [vmem:[%s262 + $0x10] sm:$0xff]
        %v325 = vld [vmem:[%s262 + $0x18] sm:$0xff]
        %v326 = vld [vmem:[%s262 + $0x20] sm:$0xff]
        %v327 = vld [vmem:[%s262 + $0x28] sm:$0xff]
        %v328 = vld [vmem:[%s262 + $0x30] sm:$0xff]
        %v329 = vld [vmem:[%s262 + $0x38] sm:$0xff]
        %v330 = vld [vmem:[%s271] sm:$0xff]
        %v331 = vld [vmem:[%s271 + $0x8] sm:$0xff]
        %v332 = vld [vmem:[%s271 + $0x10] sm:$0xff]
        %v333 = vld [vmem:[%s271 + $0x18] sm:$0xff]
        %v334 = vld [vmem:[%s271 + $0x20] sm:$0xff]
        %v335 = vld [vmem:[%s271 + $0x28] sm:$0xff]
        %v336 = vld [vmem:[%s271 + $0x30] sm:$0xff]
        %v337 = vld [vmem:[%s271 + $0x38] sm:$0xff]
        %v338 = vsub.f32 %v322, %v330
        %v339 = vsub.f32 %v323, %v331
        %v340 = vsub.f32 %v324, %v332
        %v341 = vsub.f32 %v325, %v333
        %v342 = vsub.f32 %v326, %v334
        %v343 = vsub.f32 %v327, %v335
        %v344 = vsub.f32 %v328, %v336
        %v345 = vsub.f32 %v329, %v337
        %v346 = vmul.f32 %v338, %v338
        %v347 = vmul.f32 %v339, %v339
        %v348 = vmul.f32 %v340, %v340
        %v349 = vmul.f32 %v341, %v341
        %v350 = vmul.f32 %v342, %v342
        %v351 = vmul.f32 %v343, %v343
        %v352 = vmul.f32 %v344, %v344
        %v353 = vmul.f32 %v345, %v345
        %v354 = vld [vmem:[%s300] sm:$0xff]
        %v355 = vld [vmem:[%s300 + $0x8] sm:$0xff]
        %v356 = vld [vmem:[%s300 + $0x10] sm:$0xff]
        %v357 = vld [vmem:[%s300 + $0x18] sm:$0xff]
        %v358 = vld [vmem:[%s300 + $0x20] sm:$0xff]
        %v359 = vld [vmem:[%s300 + $0x28] sm:$0xff]
        %v360 = vld [vmem:[%s300 + $0x30] sm:$0xff]
        %v361 = vld [vmem:[%s300 + $0x38] sm:$0xff]
        %v362 = vadd.f32 %v346, 0.0
        %v363 = vadd.f32 %v347, 0.0
        %v364 = vadd.f32 %v348, 0.0
        %v365 = vadd.f32 %v349, 0.0
        %v366 = vadd.f32 %v350, 0.0
        %v367 = vadd.f32 %v351, 0.0
        %v368 = vadd.f32 %v352, 0.0
        %v369 = vadd.f32 %v353, 0.0
        %v370 = vadd.f32 %v354, %v362
        %v371 = vadd.f32 %v355, %v363
        %v372 = vadd.f32 %v356, %v364
        %v373 = vadd.f32 %v357, %v365
        %v374 = vadd.f32 %v358, %v366
        %v375 = vadd.f32 %v359, %v367
        %v376 = vadd.f32 %v360, %v368
        %v377 = vadd.f32 %v361, %v369
        %378 = vst [vmem:[%s300] sm:$0xff] %v370
        %379 = vst [vmem:[%s300 + $0x8] sm:$0xff] %v371
        %380 = vst [vmem:[%s300 + $0x10] sm:$0xff] %v372
        %381 = vst [vmem:[%s300 + $0x18] sm:$0xff] %v373
        %382 = vst [vmem:[%s300 + $0x20] sm:$0xff] %v374
        %383 = vst [vmem:[%s300 + $0x28] sm:$0xff] %v375
        %384 = vst [vmem:[%s300 + $0x30] sm:$0xff] %v376
        %385 = vst [vmem:[%s300 + $0x38] sm:$0xff] %v377
        // Predicated region
        $region49: #{tpu_custom_call.1} parent=35 // pred_check
          %p386 = pneg %p310
        $region50: #{tpu_custom_call.1} parent=35 // pred_check_branch
          %388 = sbr.rel (%p386) target = $region52
        $region51: #{tpu_custom_call.1} parent=35 // pred_region
          %v389 = vld [vmem:[%s3] sm:$0x3]
          %v390 = vld [vmem:[%s2] sm:$0x3]
          %v391 = vadd.f32 %v389, 1.0
          %v392 = vmul.f32 %v390, %v390
          %v393 = vsub.f32 %v391, %v392
          %v394 = vmul.f32 %v389, 1.442695
          %v395 = vpow.pop %v394
          %v396 = vsub.f32 %v393, %v395
          %vm397 = vcmask 254976
          %v398 = vsel %vm397, %v396, 0.0
          %399 = vadd.xlane.f32.xlu0 %v398
          %v400 = vpop.xlane.xlu0 %399
          %v401 = vrot.slane %v400, 4
          %v402 = vadd.f32 %v400, %v401
          %v403 = vrot.slane %v402, 2
          %v404 = vadd.f32 %v402, %v403
          %v405 = vrot.slane %v404, 1
          %v406 = vadd.f32 %v404, %v405
          %s407 = vtos %v406
          %v408 = vstv %s407
          %v409 = vadd.f32 %v408, 0.0
          %410 = vst [vmem:[%s307] sm:$0xff] %v409
        $region52: #{tpu_custom_call.1} parent=35 // pred_fallthru
          _
        %s411 = sand.u32 %s147, 1
        %s412 = scalar_lea.sflag [#allocation4], %s411
        %s413 = sand.u32 %s147, 1
        %s414 = smul.addr %s413, 64
        %s415 = scalar_lea.vmem [#allocation7], %s414
        %s416 = sand.u32 %s173, 1
        %s417 = scalar_lea.sflag [#allocation9], %s416
        %s418 = sand.u32 %s173, 1
        %s419 = smul.addr %s418, 8
        %s420 = scalar_lea.vmem [#allocation8], %s419
        // Predicated region
        $region53: #{tpu_custom_call.1} parent=35 // pred_check
          %p421 = pneg %p157
        $region54: #{tpu_custom_call.1} parent=35 // pred_check_branch
          %423 = sbr.rel (%p421) target = $region56
        $region55: #{tpu_custom_call.1} parent=35 // pred_region
          %s425 = ssub.s32 1024, 1024
          %426 = vsyncadd %s412, %s425
          %s427 = smul.addr %s33, 8
          %s428 = smul.addr %s427, 128
          %s429 = scalar_lea.hbm %s4, %s428
          %s431 = sshll.u32 %s415, 4
          %s432 = int_to_ptr.vmem [resolvable:$true] %s431
          %434 = dma.vmem_to_hbm [thread:$0]  %s432, 1024, %s429, %s412
        $region56: #{tpu_custom_call.1} parent=35 // pred_fallthru
          _
        // Predicated region
        $region57: #{tpu_custom_call.1} parent=35 // pred_check
          %p435 = pneg %p183
        $region58: #{tpu_custom_call.1} parent=35 // pred_check_branch
          %437 = sbr.rel (%p435) target = $region60
        $region59: #{tpu_custom_call.1} parent=35 // pred_region
          %s439 = ssub.s32 128, 128
          %440 = vsyncadd %s417, %s439
          %s441 = smul.addr %s33, 128
          %s442 = scalar_lea.hbm %s5, %s441
          %s444 = sshll.u32 %s420, 4
          %s445 = int_to_ptr.vmem [resolvable:$true] %s444
          %447 = dma.vmem_to_hbm [thread:$0]  %s445, 128, %s442, %s417
        $region60: #{tpu_custom_call.1} parent=35 // pred_fallthru
          _
      $region36: #{tpu_custom_call.1} parent=5 // pred_fallthru
        _
      %p448 = scmp.le.s32.totalorder 2, %s24
      // Predicated region
      $region61: #{tpu_custom_call.1} parent=5 // pred_check
        %p449 = pneg %p448
      $region62: #{tpu_custom_call.1} parent=5 // pred_check_branch
        %451 = sbr.rel (%p449) target = $region64
      $region63: #{tpu_custom_call.1} parent=5 // pred_region
        %s452 = ssub.s32 %s24, 2
        // Predicated region
        $region65: #{tpu_custom_call.1} parent=63 // pred_check
          %p453 = pneg %p163
        $region66: #{tpu_custom_call.1} parent=63 // pred_check_branch
          %455 = sbr.rel (%p453) target = $region68
        $region67: #{tpu_custom_call.1} parent=63 // pred_region
          %s456 = sand.u32 %s148, 1
          %s457 = scalar_lea.sflag [#allocation4], %s456
          %s458 = sand.u32 %s148, 1
          %s459 = smul.addr %s458, 64
          %s460 = scalar_lea.vmem [#allocation7], %s459
          %461 = dma.done %s457, 1024
        $region68: #{tpu_custom_call.1} parent=63 // pred_fallthru
          _
        // Predicated region
        $region69: #{tpu_custom_call.1} parent=63 // pred_check
          %p462 = pneg %p189
        $region70: #{tpu_custom_call.1} parent=63 // pred_check_branch
          %464 = sbr.rel (%p462) target = $region72
        $region71: #{tpu_custom_call.1} parent=63 // pred_region
          %s465 = sand.u32 %s174, 1
          %s466 = scalar_lea.sflag [#allocation9], %s465
          %s467 = sand.u32 %s174, 1
          %s468 = smul.addr %s467, 8
          %s469 = scalar_lea.vmem [#allocation8], %s468
          %470 = dma.done %s466, 128
        $region72: #{tpu_custom_call.1} parent=63 // pred_fallthru
          _
      $region64: #{tpu_custom_call.1} parent=5 // pred_fallthru
        _
    $region6: #{tpu_custom_call.1} parent=1 // loop_footer
      %s28 = sadd.s32 1, %s24
    $region7: #{tpu_custom_call.1} parent=1 // loop_footer_branch
      %23 = sbr.rel target = $region3
    $region8: #{tpu_custom_call.1} parent=1 // loop_exit
      _
    %471 = vsyncpa [#allocation3], 1
    %s472 = scalar_lea.sflag [#allocation3], 1
    %473 = vsyncpa %s472, 1
    %474 = vsyncpa [#allocation6], 1
    %s475 = scalar_lea.sflag [#allocation6], 1
    %476 = vsyncpa %s475, 1
    %477 = vsyncpa [#allocation4], 1
    %s478 = scalar_lea.sflag [#allocation4], 1
    %479 = vsyncpa %s478, 1
    %480 = vsyncpa [#allocation9], 1
    %s481 = scalar_lea.sflag [#allocation9], 1
    %482 = vsyncpa %s481, 1

</llo_original>
